<compile_context>
chip_gen: v7x
topology: tpu7x:2x2x1
jax: 0.10.0
libtpu: 0.0.40
codegen_flags: <defaults>
</compile_context>

<pallas_src>
import jax
import jax.numpy as jnp
from jax.experimental import pallas as pl
from jax.experimental.pallas import tpu as pltpu


def _round_up(a, b):
    return -(-a // b) * b


def _parsse_kernel(x_ref, scale_ref, shift_ref, w_ref, bias_ref, o_ref):
    # x_ref:     (1, C, THW)  streamed dtype, spatial on lanes, channels on sublanes
    # scale_ref: (C, 1)   gate dtype  gamma / sqrt(var + eps)
    # shift_ref: (C, 1)   gate dtype  beta - mean * scale
    # w_ref:     (Cout, C)    streamed dtype, conv weight with BN scale folded in
    # bias_ref:  (Cout, 1) f32 conv bias with BN shift folded in
    # o_ref:     (1, C, THW)  streamed dtype
    x = x_ref[0]                                         # (C, THW)
    x_bn = x * scale_ref[...] + shift_ref[...]           # BatchNorm (eval), gate path
    logits = jnp.dot(w_ref[...], x,
                     preferred_element_type=jnp.float32) + bias_ref[...]  # 1x1 conv (MXU)
    gate = jax.nn.sigmoid(logits)                        # f32 nonlinearity
    o_ref[0] = (x_bn * gate).astype(o_ref.dtype)         # x_bn * o  (promotes to f32)


def parsse_forward(x_nchw, conv_w, conv_b, bn_gamma, bn_beta, bn_mean, bn_var,
                   eps=1e-5, t_hw=None):
    N, C, H, W = x_nchw.shape
    Cout = conv_w.shape[0]
    assert Cout == C, "ParSSE gating requires out_channels == in_channels"

    dtype = x_nchw.dtype
    itemsize = jnp.dtype(dtype).itemsize
    HW = H * W

    # Gate-path compute dtype: bf16 when streaming bf16, else f32.
    gate_dtype = jnp.bfloat16 if dtype == jnp.bfloat16 else jnp.float32
    gate_itemsize = jnp.dtype(gate_dtype).itemsize

    # Fold BN running stats into a per-channel affine; fold that affine into the
    # conv weight/bias for the logits path (x_bn is still needed for the gate).
    scale = (bn_gamma.astype(jnp.float32)
             / jnp.sqrt(bn_var.astype(jnp.float32) + eps))                  # (C,)
    shift = bn_beta.astype(jnp.float32) - bn_mean.astype(jnp.float32) * scale
    w2d = conv_w.reshape(Cout, C).astype(jnp.float32)                       # (Cout, C)
    w_eff = (w2d * scale[None, :]).astype(dtype)                            # (Cout, C)
    b_eff = (conv_b.astype(jnp.float32) + w2d @ shift).reshape(Cout, 1)     # (Cout, 1)
    scale2d = scale.reshape(C, 1).astype(gate_dtype)
    shift2d = shift.reshape(C, 1).astype(gate_dtype)

    # ---- Generation-aware VMEM budget ----
    try:
        vmem_cap = int(pltpu.get_tpu_info().vmem_capacity_bytes)
    except Exception:
        vmem_cap = 64 * 1024 * 1024        # conservative: assume v7x-sized VMEM
    if vmem_cap >= 96 * 1024 * 1024:       # v5e / v6e: 128 MiB physical VMEM
        budget, gen_limit = 40 << 20, 64 << 20
    else:                                  # v7x: 64 MiB per TensorCore
        budget, gen_limit = 24 << 20, 32 << 20

    # Per-lane VMEM cost of one grid step:
    #   2x(in) + 2x(out) double-buffered streamed blocks
    #   + 2x the in-kernel intermediates (x_bn, f32 logits, f32 gate, out cast).
    bytes_per_lane = C * (4 * itemsize + 2 * (gate_itemsize + 8 + itemsize))

    # ---- Lane-tile selection (no artificial 2048 cap) ----
    if t_hw is None:
        t_hw = budget // max(bytes_per_lane, 1)
        t_hw = int(max(128, min((t_hw // 128) * 128, 32768)))
    if t_hw >= HW:
        t_hw = HW                            # single block == full array dim
    else:
        t_hw = max(128, (t_hw // 128) * 128)  # multiple of 128 (lane constraint)

    # Keep enough grid steps to feed both v7x TensorCores (mem-bound kernel).
    min_steps = 4
    if N * pl.cdiv(HW, t_hw) < min_steps and HW > 128:
        cap = _round_up(pl.cdiv(HW, pl.cdiv(min_steps, N)), 128)
        if cap < HW:
            t_hw = max(128, min(t_hw, cap))

    n_hw = pl.cdiv(HW, t_hw)                 # ragged last block handled by Pallas
    grid = (N, n_hw)

    # vmem_limit derived from the actual per-step accounting (+ headroom).
    params_bytes = 2 * (2 * C * gate_itemsize + Cout * C * itemsize + Cout * 4)
    step_bytes = bytes_per_lane * t_hw + params_bytes
    vmem_limit_bytes = int(min(gen_limit,
                               max(16 << 20, int(step_bytes * 1.25) + (2 << 20))))

    x3d = x_nchw.reshape(N, C, HW)           # free reshape, no transpose, no pad

    cost = pl.CostEstimate(
        flops=int(2 * N * HW * C * Cout + 4 * N * HW * C),
        transcendentals=int(N * HW * Cout),
        bytes_accessed=int(2 * N * C * HW * itemsize
                           + Cout * C * itemsize + (2 * C + Cout) * 4),
    )

    out3d = pl.pallas_call(
        _parsse_kernel,
        out_shape=jax.ShapeDtypeStruct((N, C, HW), dtype),
        grid_spec=pltpu.PrefetchScalarGridSpec(
            num_scalar_prefetch=0,
            grid=grid,
            in_specs=[
                pl.BlockSpec((1, C, t_hw), lambda n, j: (n, 0, j)),
                pl.BlockSpec((C, 1), lambda n, j: (0, 0)),
                pl.BlockSpec((C, 1), lambda n, j: (0, 0)),
                pl.BlockSpec((Cout, C), lambda n, j: (0, 0)),
                pl.BlockSpec((Cout, 1), lambda n, j: (0, 0)),
            ],
            out_specs=pl.BlockSpec((1, C, t_hw), lambda n, j: (n, 0, j)),
        ),
        compiler_params=pltpu.CompilerParams(
            dimension_semantics=("parallel", "parallel"),
            vmem_limit_bytes=vmem_limit_bytes,
        ),
        cost_estimate=cost,
    )(x3d, scale2d, shift2d, w_eff, b_eff)

    return out3d.reshape(N, C, H, W)


def parsse_reference(x_nchw, conv_w, conv_b, bn_gamma, bn_beta, bn_mean, bn_var,
                     eps=1e-5):
    # Pure-JAX reference (NCHW, f32, same inference-mode semantics).
    x = x_nchw.astype(jnp.float32)
    scale = bn_gamma / jnp.sqrt(bn_var + eps)
    x_bn = (x - bn_mean[None, :, None, None]) * scale[None, :, None, None] \
           + bn_beta[None, :, None, None]
    # gap(k=1, s=1, p=0) == identity; 1x1 conv == channel matmul
    w2d = conv_w.reshape(conv_w.shape[0], conv_w.shape[1]).astype(jnp.float32)
    logits = jnp.einsum('oc,nchw->nohw', w2d, x_bn) + conv_b[None, :, None, None]
    gate = jax.nn.sigmoid(logits)
    return x_bn * gate


def _make_params(key, C):
    k_w, k_b, k_g, k_be, k_m, k_v = jax.random.split(key, 6)
    conv_w = jax.random.normal(k_w, (C, C, 1, 1), dtype=jnp.float32) * 0.1
    conv_b = jax.random.normal(k_b, (C,), dtype=jnp.float32) * 0.1
    bn_gamma = 1.0 + 0.1 * jax.random.normal(k_g, (C,), dtype=jnp.float32)
    bn_beta = 0.1 * jax.random.normal(k_be, (C,), dtype=jnp.float32)
    bn_mean = 0.1 * jax.random.normal(k_m, (C,), dtype=jnp.float32)
    bn_var = jnp.abs(jax.random.normal(k_v, (C,), dtype=jnp.float32)) + 0.5
    return conv_w, conv_b, bn_gamma, bn_beta, bn_mean, bn_var


if __name__ == "__main__":
    key = jax.random.PRNGKey(0)
    k1, k2, k3, k4, k5, k6 = jax.random.split(key, 6)

    # ---- Test 1: f32, HW = 256 (tile-divisible spatial axis) ----
    N, C, H, W = 2, 16, 16, 16
    x = jax.random.normal(k1, (N, C, H, W), dtype=jnp.float32)
    params = _make_params(k2, C)

    out = parsse_forward(x, *params)
    out = jax.block_until_ready(out)
    ref = parsse_reference(x, *params)
    assert out.shape == (N, C, H, W)
    assert jnp.allclose(out, ref, atol=1e-4, rtol=1e-4), "f32 mismatch vs reference"

    # ---- Test 2: f32, HW = 400 -> ragged last spatial block (no pad, no slice) ----
    N2, C2, H2, W2 = 2, 32, 20, 20
    x2 = jax.random.normal(k3, (N2, C2, H2, W2), dtype=jnp.float32)
    params2 = _make_params(k4, C2)

    out2 = parsse_forward(x2, *params2)
    out2 = jax.block_until_ready(out2)
    ref2 = parsse_reference(x2, *params2)
    assert out2.shape == (N2, C2, H2, W2)
    assert jnp.allclose(out2, ref2, atol=1e-4, rtol=1e-4), "ragged f32 mismatch"

    # ---- Test 3: bf16 streamed dtype (bf16 gate path, f32 matmul accumulation) ----
    x_bf = x.astype(jnp.bfloat16)
    out_bf = parsse_forward(x_bf, *params)
    out_bf = jax.block_until_ready(out_bf)
    assert out_bf.dtype == jnp.bfloat16
    ref_bf = parsse_reference(x_bf.astype(jnp.float32), *params)
    assert jnp.allclose(out_bf.astype(jnp.float32), ref_bf, atol=8e-2, rtol=8e-2), \
        "bf16 mismatch vs reference"

    # ---- Test 4: HW < 128 (full-extent lane block) ----
    N4, C4, H4, W4 = 2, 16, 8, 8
    x4 = jax.random.normal(k5, (N4, C4, H4, W4), dtype=jnp.float32)
    params4 = _make_params(k6, C4)
    out4 = parsse_forward(x4, *params4)
    out4 = jax.block_until_ready(out4)
    ref4 = parsse_reference(x4, *params4)
    assert jnp.allclose(out4, ref4, atol=1e-4, rtol=1e-4), "small-HW f32 mismatch"

    print("KERNEL_OK")
</pallas_src>

<mosaic_0001>
module attributes {stable_mosaic.version = 11 : i64} {
  func.func @_parsse_kernel(%arg0: i32, %arg1: i32, %arg2: memref<1x16x128xf32, #tpu.memory_space<vmem>>, %arg3: memref<16x1xf32, #tpu.memory_space<vmem>>, %arg4: memref<16x1xf32, #tpu.memory_space<vmem>>, %arg5: memref<16x16xf32, #tpu.memory_space<vmem>>, %arg6: memref<16x1xf32, #tpu.memory_space<vmem>>, %arg7: memref<1x16x128xf32, #tpu.memory_space<vmem>>) attributes {dimension_semantics = [#tpu.dimension_semantics<parallel>, #tpu.dimension_semantics<parallel>], iteration_bounds = array<i64: 2, 2>, scalar_prefetch = 0 : i64, scratch_operands = 0 : i64, tpu.core_type = #tpu.core_type<tc>, window_params = [{transform_indices = @transform_0, window_bounds = array<i64: 1, 16, 128>}, {pipeline_mode = #tpu.pipeline_mode<synchronous>, transform_indices = @transform_1, window_bounds = array<i64: 16, 1>}, {pipeline_mode = #tpu.pipeline_mode<synchronous>, transform_indices = @transform_2, window_bounds = array<i64: 16, 1>}, {pipeline_mode = #tpu.pipeline_mode<synchronous>, transform_indices = @transform_3, window_bounds = array<i64: 16, 16>}, {pipeline_mode = #tpu.pipeline_mode<synchronous>, transform_indices = @transform_4, window_bounds = array<i64: 16, 1>}, {transform_indices = @transform_5, window_bounds = array<i64: 1, 16, 128>}]} {
    %c0 = arith.constant 0 : index
    %c0_0 = arith.constant 0 : index
    %c0_1 = arith.constant 0 : index
    %0 = vector.load %arg2[%c0, %c0_0, %c0_1] : memref<1x16x128xf32, #tpu.memory_space<vmem>>, vector<1x16x128xf32>
    %1 = vector.shape_cast %0 : vector<1x16x128xf32> to vector<16x128xf32>
    %c0_2 = arith.constant 0 : index
    %c0_3 = arith.constant 0 : index
    %2 = vector.load %arg3[%c0_2, %c0_3] : memref<16x1xf32, #tpu.memory_space<vmem>>, vector<16x1xf32>
    %3 = vector.broadcast %2 : vector<16x1xf32> to vector<16x128xf32>
    %4 = arith.mulf %1, %3 : vector<16x128xf32>
    %c0_4 = arith.constant 0 : index
    %c0_5 = arith.constant 0 : index
    %5 = vector.load %arg4[%c0_4, %c0_5] : memref<16x1xf32, #tpu.memory_space<vmem>>, vector<16x1xf32>
    %6 = vector.broadcast %5 : vector<16x1xf32> to vector<16x128xf32>
    %7 = arith.addf %4, %6 : vector<16x128xf32>
    %c0_6 = arith.constant 0 : index
    %c0_7 = arith.constant 0 : index
    %8 = vector.load %arg5[%c0_6, %c0_7] : memref<16x16xf32, #tpu.memory_space<vmem>>, vector<16x16xf32>
    %cst = arith.constant dense<0.000000e+00> : vector<16x128xf32>
    %9 = tpu.matmul %8, %1, %cst {dimension_numbers = #tpu.dot_dimension_numbers<[1], [0], [0], [1], [0, 0, 1, 1], [], []>} : vector<16x16xf32>, vector<16x128xf32>, vector<16x128xf32> -> vector<16x128xf32>
    %c0_8 = arith.constant 0 : index
    %c0_9 = arith.constant 0 : index
    %10 = vector.load %arg6[%c0_8, %c0_9] : memref<16x1xf32, #tpu.memory_space<vmem>>, vector<16x1xf32>
    %11 = vector.broadcast %10 : vector<16x1xf32> to vector<16x128xf32>
    %12 = arith.addf %9, %11 : vector<16x128xf32>
    %13 = arith.negf %12 : vector<16x128xf32>
    %14 = math.exp %13 : vector<16x128xf32>
    %cst_10 = arith.constant 1.000000e+00 : f32
    %15 = vector.broadcast %cst_10 : f32 to vector<16x128xf32>
    %16 = arith.addf %15, %14 : vector<16x128xf32>
    %17 = arith.divf %15, %16 : vector<16x128xf32>
    %18 = arith.mulf %7, %17 : vector<16x128xf32>
    %c0_11 = arith.constant 0 : index
    %c0_12 = arith.constant 0 : index
    %c0_13 = arith.constant 0 : index
    %19 = vector.load %arg7[%c0_11, %c0_12, %c0_13] : memref<1x16x128xf32, #tpu.memory_space<vmem>>, vector<1x16x128xf32>
    %20 = vector.shape_cast %19 : vector<1x16x128xf32> to vector<16x128xf32>
    %21 = vector.shape_cast %18 : vector<16x128xf32> to vector<1x16x128xf32>
    tpu.vector_store %arg7[%c0_11, %c0_12, %c0_13], %21 {strides = array<i32>} : memref<1x16x128xf32, #tpu.memory_space<vmem>>, vector<1x16x128xf32>,
    return
  }
  func.func @transform_0(%arg0: i32, %arg1: i32) -> (i32, i32, i32) {
    %c0_i32 = arith.constant 0 : i32
    %c0_i32_0 = arith.constant 0 : i32
    return %arg0, %c0_i32, %arg1 : i32, i32, i32
  }
  func.func @transform_1(%arg0: i32, %arg1: i32) -> (i32, i32) {
    %c0_i32 = arith.constant 0 : i32
    %c0_i32_0 = arith.constant 0 : i32
    %c0_i32_1 = arith.constant 0 : i32
    return %c0_i32, %c0_i32_0 : i32, i32
  }
  func.func @transform_2(%arg0: i32, %arg1: i32) -> (i32, i32) {
    %c0_i32 = arith.constant 0 : i32
    %c0_i32_0 = arith.constant 0 : i32
    %c0_i32_1 = arith.constant 0 : i32
    return %c0_i32, %c0_i32_0 : i32, i32
  }
  func.func @transform_3(%arg0: i32, %arg1: i32) -> (i32, i32) {
    %c0_i32 = arith.constant 0 : i32
    %c0_i32_0 = arith.constant 0 : i32
    %c0_i32_1 = arith.constant 0 : i32
    return %c0_i32, %c0_i32_0 : i32, i32
  }
  func.func @transform_4(%arg0: i32, %arg1: i32) -> (i32, i32) {
    %c0_i32 = arith.constant 0 : i32
    %c0_i32_0 = arith.constant 0 : i32
    %c0_i32_1 = arith.constant 0 : i32
    return %c0_i32, %c0_i32_0 : i32, i32
  }
  func.func @transform_5(%arg0: i32, %arg1: i32) -> (i32, i32, i32) {
    %c0_i32 = arith.constant 0 : i32
    %c0_i32_0 = arith.constant 0 : i32
    return %arg0, %c0_i32, %arg1 : i32, i32, i32
  }
}

</mosaic_0001>

<llo_original>
// kernel: tpu_custom_call.1
$region0: #{tpu_custom_call.1}
  #allocation0 [shape = 'u32[]', space=smem, size = 0x4, offset = 0x4, fixed_abs, tag = 'smem constant byte address 0x4 - core index']
  #allocation1 [shape = 'u32[144,128]{1,0:T(1,128)}', space=vmem, size = 0x12000, scoped, tag = 'internal scratch']
  %s0 = inlined_call_operand.hbm [shape: f32[2,16,256], index: 0, kind: input, shape index: {}]
  %s1 = inlined_call_operand.vmem [shape: f32[16,1], index: 1, kind: input, shape index: {}]
  %s2 = inlined_call_operand.vmem [shape: f32[16,1], index: 2, kind: input, shape index: {}]
  %s3 = inlined_call_operand.vmem [shape: f32[16,16], index: 3, kind: input, shape index: {}]
  %s4 = inlined_call_operand.vmem [shape: f32[16,1], index: 4, kind: input, shape index: {}]
  %s5 = inlined_call_operand.hbm [shape: f32[2,16,256], index: 5, kind: output, shape index: {}]
  %s6 = sld [smem:[#allocation0]]
  $region57: #{tpu_custom_call.1} parent=0
    _
  %s8 = ssub.s32 1, %s6
  %s9 = scalar_select 0, %s8, %s6
  $region1: #{tpu_custom_call.1} parent=0
    #allocation2 [shape = 'u8[16384]{0}', space=vmem, size = 0x4000, scoped, tag = 'input window, operand 0']
    #allocation3 [shape = 's32[2]{0}', space=sflag, size = 0x8, scoped, tag = 'scoped memory for tpu_custom_call.1']
    #allocation4 [shape = 's32[2]{0}', space=sflag, size = 0x8, scoped, tag = 'scoped memory for tpu_custom_call.1']
    #allocation5 [shape = 'u8[16384]{0}', space=vmem, size = 0x4000, scoped, tag = 'output window, operand 0']
    %10 = vsyncpa [#allocation3], 0
    %s11 = scalar_lea.sflag [#allocation3], 1
    %12 = vsyncpa %s11, 0
    %13 = vsyncpa [#allocation4], 0
    %s14 = scalar_lea.sflag [#allocation4], 1
    %15 = vsyncpa %s14, 0
    loop: start=0, step=1, limit=6
    $region2: #{tpu_custom_call.1} parent=1 // loop_pre_header
      _
    $region3: #{tpu_custom_call.1} parent=1 // loop_header
      %s17 = sphi 0, %s21
      %p18 = scmp.ge.s32.totalorder %s17, 6
      %s24 = sphi 0, %s36
      %s25 = sphi 0, %s32
      %s26 = sphi 0, %s24
      %s27 = sphi 0, %s25
      %s28 = sphi 0, %s26
      %s29 = sphi 0, %s27
      %s41 = sphi 0, %s43
      %s44 = sphi 0, %s41
      %s45 = sphi 0, %s44
      %s61 = sphi 0, %s45
      %s65 = sphi 0, %s65
      %s67 = sphi 0, %s65
      %s68 = sphi 0, %s67
      %s82 = sphi 0, %s68
      %s86 = sphi 0, %s86
      %s88 = sphi 0, %s86
      %s89 = sphi 0, %s88
      %s103 = sphi 0, %s89
      %s107 = sphi 0, %s107
      %s109 = sphi 0, %s107
      %s110 = sphi 0, %s109
      %s124 = sphi 0, %s110
      %s128 = sphi 0, %s128
      %s130 = sphi 0, %s128
      %s131 = sphi 0, %s130
      %s145 = sphi 0, %s131
      %s153 = sphi 0, %s155
      %s156 = sphi 0, %s153
      %s157 = sphi 0, %s156
      %s173 = sphi 0, %s157
    $region4: #{tpu_custom_call.1} parent=1 // loop_header_branch
      %20 = sbr.rel (%p18) target = $region8
    $region5: #{tpu_custom_call.1} parent=1 // loop_body
      %s22 = ssub.s32 %s17, 1
      %s23 = ssub.s32 %s17, 2
      %s30 = sadd.s32 1, %s25
      %p31 = scmp.ge.s32.totalorder %s30, 2
      %s32 = scalar_select %p31, 0, %s30
      %s33 = sadd.s32 1, %s24
      %s34 = scalar_select %p31, %s33, %s24
      %p35 = scmp.ge.s32.totalorder %s34, 2
      %s36 = scalar_select %p35, 0, %s34
      %s37 = ssub.s32 %s24, %s36
      %s38 = ssub.s32 %s25, %s32
      %s39 = sor.u32 %s37, %s38
      %p40 = scmp.eq.s32.totalorder %s39, 0
      %s42 = sadd.s32 %s41, 1
      %s43 = scalar_select %p40, %s41, %s42
      %p46 = pneg %p40
      %p47 = scmp.eq.s32.totalorder %s17, 3
      %p48 = por %p46, %p47
      %p49 = scmp.ne.s32.totalorder %s41, %s44
      %p50 = scmp.eq.s32.totalorder %s17, 0
      %p51 = por %p49, %p50
      %p52 = scmp.ne.s32.totalorder %s41, %s44
      %p53 = scmp.eq.s32.totalorder %s22, 3
      %p54 = por %p52, %p53
      %p55 = scmp.ne.s32.totalorder %s44, %s45
      %p56 = scmp.eq.s32.totalorder %s22, 0
      %p57 = por %p55, %p56
      %p58 = scmp.ne.s32.totalorder %s44, %s45
      %p59 = scmp.eq.s32.totalorder %s23, 3
      %p60 = por %p58, %p59
      %p62 = scmp.ne.s32.totalorder %s45, %s61
      %p63 = scmp.eq.s32.totalorder %s23, 0
      %p64 = por %p62, %p63
      %s66 = sadd.s32 %s65, 1
      %p69 = scmp.eq.s32.totalorder %s17, 3
      %p70 = scmp.ne.s32.totalorder %s65, %s67
      %p71 = scmp.eq.s32.totalorder %s17, 0
      %p72 = por %p70, %p71
      %p73 = scmp.ne.s32.totalorder %s65, %s67
      %p74 = scmp.eq.s32.totalorder %s22, 3
      %p75 = por %p73, %p74
      %p76 = scmp.ne.s32.totalorder %s67, %s68
      %p77 = scmp.eq.s32.totalorder %s22, 0
      %p78 = por %p76, %p77
      %p79 = scmp.ne.s32.totalorder %s67, %s68
      %p80 = scmp.eq.s32.totalorder %s23, 3
      %p81 = por %p79, %p80
      %p83 = scmp.ne.s32.totalorder %s68, %s82
      %p84 = scmp.eq.s32.totalorder %s23, 0
      %p85 = por %p83, %p84
      %s87 = sadd.s32 %s86, 1
      %p90 = scmp.eq.s32.totalorder %s17, 3
      %p91 = scmp.ne.s32.totalorder %s86, %s88
      %p92 = scmp.eq.s32.totalorder %s17, 0
      %p93 = por %p91, %p92
      %p94 = scmp.ne.s32.totalorder %s86, %s88
      %p95 = scmp.eq.s32.totalorder %s22, 3
      %p96 = por %p94, %p95
      %p97 = scmp.ne.s32.totalorder %s88, %s89
      %p98 = scmp.eq.s32.totalorder %s22, 0
      %p99 = por %p97, %p98
      %p100 = scmp.ne.s32.totalorder %s88, %s89
      %p101 = scmp.eq.s32.totalorder %s23, 3
      %p102 = por %p100, %p101
      %p104 = scmp.ne.s32.totalorder %s89, %s103
      %p105 = scmp.eq.s32.totalorder %s23, 0
      %p106 = por %p104, %p105
      %s108 = sadd.s32 %s107, 1
      %p111 = scmp.eq.s32.totalorder %s17, 3
      %p112 = scmp.ne.s32.totalorder %s107, %s109
      %p113 = scmp.eq.s32.totalorder %s17, 0
      %p114 = por %p112, %p113
      %p115 = scmp.ne.s32.totalorder %s107, %s109
      %p116 = scmp.eq.s32.totalorder %s22, 3
      %p117 = por %p115, %p116
      %p118 = scmp.ne.s32.totalorder %s109, %s110
      %p119 = scmp.eq.s32.totalorder %s22, 0
      %p120 = por %p118, %p119
      %p121 = scmp.ne.s32.totalorder %s109, %s110
      %p122 = scmp.eq.s32.totalorder %s23, 3
      %p123 = por %p121, %p122
      %p125 = scmp.ne.s32.totalorder %s110, %s124
      %p126 = scmp.eq.s32.totalorder %s23, 0
      %p127 = por %p125, %p126
      %s129 = sadd.s32 %s128, 1
      %p132 = scmp.eq.s32.totalorder %s17, 3
      %p133 = scmp.ne.s32.totalorder %s128, %s130
      %p134 = scmp.eq.s32.totalorder %s17, 0
      %p135 = por %p133, %p134
      %p136 = scmp.ne.s32.totalorder %s128, %s130
      %p137 = scmp.eq.s32.totalorder %s22, 3
      %p138 = por %p136, %p137
      %p139 = scmp.ne.s32.totalorder %s130, %s131
      %p140 = scmp.eq.s32.totalorder %s22, 0
      %p141 = por %p139, %p140
      %p142 = scmp.ne.s32.totalorder %s130, %s131
      %p143 = scmp.eq.s32.totalorder %s23, 3
      %p144 = por %p142, %p143
      %p146 = scmp.ne.s32.totalorder %s131, %s145
      %p147 = scmp.eq.s32.totalorder %s23, 0
      %p148 = por %p146, %p147
      %s149 = ssub.s32 %s24, %s36
      %s150 = ssub.s32 %s25, %s32
      %s151 = sor.u32 %s149, %s150
      %p152 = scmp.eq.s32.totalorder %s151, 0
      %s154 = sadd.s32 %s153, 1
      %s155 = scalar_select %p152, %s153, %s154
      %p158 = pneg %p152
      %p159 = scmp.eq.s32.totalorder %s17, 3
      %p160 = por %p158, %p159
      %p161 = scmp.ne.s32.totalorder %s153, %s156
      %p162 = scmp.eq.s32.totalorder %s17, 0
      %p163 = por %p161, %p162
      %p164 = scmp.ne.s32.totalorder %s153, %s156
      %p165 = scmp.eq.s32.totalorder %s22, 3
      %p166 = por %p164, %p165
      %p167 = scmp.ne.s32.totalorder %s156, %s157
      %p168 = scmp.eq.s32.totalorder %s22, 0
      %p169 = por %p167, %p168
      %p170 = scmp.ne.s32.totalorder %s156, %s157
      %p171 = scmp.eq.s32.totalorder %s23, 3
      %p172 = por %p170, %p171
      %p174 = scmp.ne.s32.totalorder %s157, %s173
      %p175 = scmp.eq.s32.totalorder %s23, 0
      %p176 = por %p174, %p175
      %p177 = scmp.le.s32.totalorder 1, %s17
      %p178 = scmp.lt.s32.totalorder %s17, 5
      %p179 = pnand %p177, %p178
      %p180 = pneg %p179
      // Predicated region
      $region9: #{tpu_custom_call.1} parent=5 // pred_check
        _
      $region10: #{tpu_custom_call.1} parent=5 // pred_check_branch
        %182 = sbr.rel (%p179) target = $region12
      $region11: #{tpu_custom_call.1} parent=5 // pred_region
        %s183 = ssub.s32 %s17, 1
        // Predicated region
        $region13: #{tpu_custom_call.1} parent=11 // pred_check
          %p184 = pneg %p78
        $region14: #{tpu_custom_call.1} parent=11 // pred_check_branch
          %186 = sbr.rel (%p184) target = $region16
        $region15: #{tpu_custom_call.1} parent=11 // pred_region
          _
        $region16: #{tpu_custom_call.1} parent=11 // pred_fallthru
          _
        // Predicated region
        $region17: #{tpu_custom_call.1} parent=11 // pred_check
          %p187 = pneg %p99
        $region18: #{tpu_custom_call.1} parent=11 // pred_check_branch
          %189 = sbr.rel (%p187) target = $region20
        $region19: #{tpu_custom_call.1} parent=11 // pred_region
          _
        $region20: #{tpu_custom_call.1} parent=11 // pred_fallthru
          _
        // Predicated region
        $region21: #{tpu_custom_call.1} parent=11 // pred_check
          %p190 = pneg %p120
        $region22: #{tpu_custom_call.1} parent=11 // pred_check_branch
          %192 = sbr.rel (%p190) target = $region24
        $region23: #{tpu_custom_call.1} parent=11 // pred_region
          _
        $region24: #{tpu_custom_call.1} parent=11 // pred_fallthru
          _
        // Predicated region
        $region25: #{tpu_custom_call.1} parent=11 // pred_check
          %p193 = pneg %p141
        $region26: #{tpu_custom_call.1} parent=11 // pred_check_branch
          %195 = sbr.rel (%p193) target = $region28
        $region27: #{tpu_custom_call.1} parent=11 // pred_region
          _
        $region28: #{tpu_custom_call.1} parent=11 // pred_fallthru
          _
      $region12: #{tpu_custom_call.1} parent=5 // pred_fallthru
        _
      %p196 = scmp.lt.s32.totalorder %s17, 4
      // Predicated region
      $region29: #{tpu_custom_call.1} parent=5 // pred_check
        %p197 = pneg %p196
      $region30: #{tpu_custom_call.1} parent=5 // pred_check_branch
        %199 = sbr.rel (%p197) target = $region32
      $region31: #{tpu_custom_call.1} parent=5 // pred_region
        // Predicated region
        $region33: #{tpu_custom_call.1} parent=31 // pred_check
          %p200 = pneg %p51
        $region34: #{tpu_custom_call.1} parent=31 // pred_check_branch
          %202 = sbr.rel (%p200) target = $region36
        $region35: #{tpu_custom_call.1} parent=31 // pred_region
          %s203 = sand.u32 %s41, 1
          %s204 = scalar_lea.sflag [#allocation3], %s203
          %s205 = sand.u32 %s41, 1
          %s206 = smul.addr %s205, 16
          %s207 = scalar_lea.vmem [#allocation2], %s206
          %s209 = ssub.s32 256, 256
          %210 = vsyncadd %s204, %s209
          %s211 = smul.addr %s24, 4
          %s212 = sadd.s32 %s25, %s211
          %s213 = smul.addr %s212, 128
          %s214 = scalar_lea.hbm %s0, %s213
          %s215 = sshll.u32 %s207, 4
          %s216 = int_to_ptr.vmem [resolvable:$true] %s215
          %221 = dma.hbm_to_vmem [thread:$0]  %s214, 256, %s216, %s204, 256, 128, 8
        $region36: #{tpu_custom_call.1} parent=31 // pred_fallthru
          _
      $region32: #{tpu_custom_call.1} parent=5 // pred_fallthru
        _
      %p222 = scmp.le.s32.totalorder 1, %s17
      %p223 = scmp.lt.s32.totalorder %s17, 5
      %p224 = pnand %p222, %p223
      %p225 = pneg %p224
      // Predicated region
      $region37: #{tpu_custom_call.1} parent=5 // pred_check
        _
      $region38: #{tpu_custom_call.1} parent=5 // pred_check_branch
        %227 = sbr.rel (%p224) target = $region40
      $region39: #{tpu_custom_call.1} parent=5 // pred_region
        %s228 = ssub.s32 %s17, 1
        %s229 = sand.u32 %s44, 1
        %s230 = scalar_lea.sflag [#allocation3], %s229
        %s231 = sand.u32 %s44, 1
        %s232 = smul.addr %s231, 16
        %s233 = scalar_lea.vmem [#allocation2], %s232
        // Predicated region
        $region41: #{tpu_custom_call.1} parent=39 // pred_check
          %p234 = pneg %p57
        $region42: #{tpu_custom_call.1} parent=39 // pred_check_branch
          %236 = sbr.rel (%p234) target = $region44
        $region43: #{tpu_custom_call.1} parent=39 // pred_region
          %237 = dma.done %s230, 256
        $region44: #{tpu_custom_call.1} parent=39 // pred_fallthru
          _
        %s238 = sand.u32 %s44, 1
        %s239 = scalar_lea.sflag [#allocation3], %s238
        %s240 = sand.u32 %s44, 1
        %s241 = smul.addr %s240, 16
        %s242 = scalar_lea.vmem [#allocation2], %s241
        %p243 = pneg %p57
        %p244 = pneg %p54
        %p245 = pneg %p78
        %p246 = pneg %p75
        %p247 = pneg %p99
        %p248 = pneg %p96
        %p249 = pneg %p120
        %p250 = pneg %p117
        %p251 = pneg %p141
        %p252 = pneg %p138
        %p253 = pneg %p169
        %p254 = pneg %p166
        %s255 = sand.u32 %s156, 1
        %s256 = scalar_lea.sflag [#allocation4], %s255
        %s257 = sand.u32 %s156, 1
        %s258 = smul.addr %s257, 16
        %s259 = scalar_lea.vmem [#allocation5], %s258
        %v260 = vld [vmem:[%s233] sm:$0xff]
        %v261 = vld [vmem:[%s233 + $0x8] sm:$0xff]
        %v262 = vld [vmem:[%s1] sm:$0xff]
        %v263 = vld [vmem:[%s1 + $0x8] sm:$0xff]
        %265 = vset.pattern.permute.xlu0 0
        %266 = vperm.xlu0 %265, %v262
        %v267 = vpop.permute.xlu0 %266
        %270 = vset.pattern.permute.xlu0 0
        %271 = vperm.xlu0 %270, %v263
        %v272 = vpop.permute.xlu0 %271
        %v274 = vmul.f32 %v260, %v267
        %v275 = vmul.f32 %v261, %v272
        %v276 = vld [vmem:[%s2] sm:$0xff]
        %v277 = vld [vmem:[%s2 + $0x8] sm:$0xff]
        %279 = vset.pattern.permute.xlu0 0
        %280 = vperm.xlu0 %279, %v276
        %v281 = vpop.permute.xlu0 %280
        %284 = vset.pattern.permute.xlu0 0
        %285 = vperm.xlu0 %284, %v277
        %v286 = vpop.permute.xlu0 %285
        %v288 = vadd.f32 %v274, %v281
        %v289 = vadd.f32 %v275, %v286
        %v290 = vld [vmem:[%s3] sm:$0xff]
        %v291 = vld [vmem:[%s3 + $0x8] sm:$0xff]
        %v292 = vld [vmem:[%s4] sm:$0xff]
        %v293 = vld [vmem:[%s4 + $0x8] sm:$0xff]
        %295 = vset.pattern.permute.xlu0 0
        %296 = vperm.xlu0 %295, %v292
        %v297 = vpop.permute.xlu0 %296
        %300 = vset.pattern.permute.xlu0 0
        %301 = vperm.xlu0 %300, %v293
        %v302 = vpop.permute.xlu0 %301
        %vm304 = vcmask 130048
        %v306 = vsel %vm304, %v290, 0
        %v309 = vsel %vm304, %v291, 0
        %311 = vmatprep.subr.mxu0 0.0
        %312 = vmatpush1.msra.mxu0 %v260
        %313 = vmatprep.subr.mxu0 0.0
        %314 = vmatpush1.msra.mxu0 %v261
        %315 = vmatprep.subr.mxu0 0.0
        %316 = vmatpush1.msra.mxu0 0.0
        %317 = vmatprep.subr.mxu0 0.0
        %318 = vmatpush1.msra.mxu0 0.0
        %319 = vmatprep.subr.mxu0 0.0
        %320 = vmatpush1.msra.mxu0 0.0
        %321 = vmatprep.subr.mxu0 0.0
        %322 = vmatpush1.msra.mxu0 0.0
        %323 = vmatprep.subr.mxu0 0.0
        %324 = vmatpush1.msra.mxu0 0.0
        %325 = vmatprep.subr.mxu0 0.0
        %326 = vmatpush1.msra.mxu0 0.0
        %327 = vmatprep.subr.mxu0 0.0
        %328 = vmatpush1.msra.mxu0 0.0
        %329 = vmatprep.subr.mxu0 0.0
        %330 = vmatpush1.msra.mxu0 0.0
        %331 = vmatprep.subr.mxu0 0.0
        %332 = vmatpush1.msra.mxu0 0.0
        %333 = vmatprep.subr.mxu0 0.0
        %334 = vmatpush1.msra.mxu0 0.0
        %335 = vmatprep.subr.mxu0 0.0
        %336 = vmatpush1.msra.mxu0 0.0
        %337 = vmatprep.subr.mxu0 0.0
        %338 = vmatpush1.msra.mxu0 0.0
        %339 = vmatprep.subr.mxu0 0.0
        %340 = vmatpush1.msra.mxu0 0.0
        %341 = vmatprep.subr.mxu0 0.0
        %342 = vmatpush1.msra.mxu0 0.0
        %343 = vmatprep.subr.mxu0 0.0
        %344 = vmatpush1.msra.mxu0 0.0
        %345 = vmatprep.subr.mxu0 0.0
        %346 = vmatpush1.msra.mxu0 0.0
        %347 = vmatprep.subr.mxu0 0.0
        %348 = vmatpush1.msra.mxu0 0.0
        %349 = vmatprep.subr.mxu0 0.0
        %350 = vmatpush1.msra.mxu0 0.0
        %351 = vmatprep.subr.mxu0 0.0
        %352 = vmatpush1.msra.mxu0 0.0
        %353 = vmatprep.subr.mxu0 0.0
        %354 = vmatpush1.msra.mxu0 0.0
        %355 = vmatprep.subr.mxu0 0.0
        %356 = vmatpush1.msra.mxu0 0.0
        %357 = vmatprep.subr.mxu0 0.0
        %358 = vmatpush1.msra.mxu0 0.0
        %359 = vmatprep.subr.mxu0 0.0
        %360 = vmatpush1.msra.mxu0 0.0
        %361 = vmatprep.subr.mxu0 0.0
        %362 = vmatpush1.msra.mxu0 0.0
        %363 = vmatprep.subr.mxu0 0.0
        %364 = vmatpush1.msra.mxu0 0.0
        %365 = vmatprep.subr.mxu0 0.0
        %366 = vmatpush1.msra.mxu0 0.0
        %367 = vmatprep.subr.mxu0 0.0
        %368 = vmatpush1.msra.mxu0 0.0
        %369 = vmatprep.subr.mxu0 0.0
        %370 = vmatpush1.msra.mxu0 0.0
        %371 = vmatprep.subr.mxu0 0.0
        %372 = vmatpush1.msra.mxu0 0.0
        %373 = vmatprep.subr.mxu0 0.0
        %374 = vmatpush1.msra.mxu0 0.0
        %375 = vmatprep.mubr.f32.mxu0 0.0
        %376 = vmatmul.mubr.f32.gmra.mrb[0].mxu0 %v306
        %v377 = vpop.f32.mrb[0].mxu0
        %v378 = vadd.f32 %v297, %v377
        %v379 = vpop.f32.mrb[0].mxu0
        %380 = vmatprep.mubr.f32.mxu0 0.0
        %381 = vmatmul.mubr.f32.gmra.mrb[0].mxu0 %v309
        %v382 = vpop.f32.mrb[0].mxu0
        %v383 = vadd.f32 %v302, %v382
        %v384 = vpop.f32.mrb[0].mxu0
        %385 = vdwg.mxu0
        %v386 = vxor.u32 %v378, 2147483648
        %v387 = vxor.u32 %v383, 2147483648
        %v388 = vmul.f32 %v386, 1.442695
        %v389 = vpow.pop %v388
        %v390 = vmul.f32 %v387, 1.442695
        %v391 = vpow.pop %v390
        %v392 = vadd.f32 %v389, 1.0
        %v393 = vadd.f32 %v391, 1.0
        %v394 = vrcp.pop %v392
        %v395 = vmul.f32 1.0, %v394
        %v396 = vrcp.pop %v393
        %v397 = vmul.f32 1.0, %v396
        %v398 = vmul.f32 %v288, %v395
        %v399 = vmul.f32 %v289, %v397
        %400 = vst [vmem:[%s259] sm:$0xff] %v398
        %401 = vst [vmem:[%s259 + $0x8] sm:$0xff] %v399
        %s402 = sand.u32 %s156, 1
        %s403 = scalar_lea.sflag [#allocation4], %s402
        %s404 = sand.u32 %s156, 1
        %s405 = smul.addr %s404, 16
        %s406 = scalar_lea.vmem [#allocation5], %s405
        // Predicated region
        $region45: #{tpu_custom_call.1} parent=39 // pred_check
          %p407 = pneg %p166
        $region46: #{tpu_custom_call.1} parent=39 // pred_check_branch
          %409 = sbr.rel (%p407) target = $region48
        $region47: #{tpu_custom_call.1} parent=39 // pred_region
          %s411 = ssub.s32 256, 256
          %412 = vsyncadd %s403, %s411
          %s413 = smul.addr %s26, 4
          %s414 = sadd.s32 %s27, %s413
          %s415 = smul.addr %s414, 128
          %s416 = scalar_lea.hbm %s5, %s415
          %s417 = sshll.u32 %s406, 4
          %s418 = int_to_ptr.vmem [resolvable:$true] %s417
          %423 = dma.vmem_to_hbm [thread:$0]  %s418, 256, %s416, %s403, 128, 256, 8
        $region48: #{tpu_custom_call.1} parent=39 // pred_fallthru
          _
      $region40: #{tpu_custom_call.1} parent=5 // pred_fallthru
        _
      %p424 = scmp.le.s32.totalorder 2, %s17
      // Predicated region
      $region49: #{tpu_custom_call.1} parent=5 // pred_check
        %p425 = pneg %p424
      $region50: #{tpu_custom_call.1} parent=5 // pred_check_branch
        %427 = sbr.rel (%p425) target = $region52
      $region51: #{tpu_custom_call.1} parent=5 // pred_region
        %s428 = ssub.s32 %s17, 2
        // Predicated region
        $region53: #{tpu_custom_call.1} parent=51 // pred_check
          %p429 = pneg %p172
        $region54: #{tpu_custom_call.1} parent=51 // pred_check_branch
          %431 = sbr.rel (%p429) target = $region56
        $region55: #{tpu_custom_call.1} parent=51 // pred_region
          %s432 = sand.u32 %s157, 1
          %s433 = scalar_lea.sflag [#allocation4], %s432
          %s434 = sand.u32 %s157, 1
          %s435 = smul.addr %s434, 16
          %s436 = scalar_lea.vmem [#allocation5], %s435
          %437 = dma.done %s433, 256
        $region56: #{tpu_custom_call.1} parent=51 // pred_fallthru
          _
      $region52: #{tpu_custom_call.1} parent=5 // pred_fallthru
        _
    $region6: #{tpu_custom_call.1} parent=1 // loop_footer
      %s21 = sadd.s32 1, %s17
    $region7: #{tpu_custom_call.1} parent=1 // loop_footer_branch
      %16 = sbr.rel target = $region3
    $region8: #{tpu_custom_call.1} parent=1 // loop_exit
      _
    %438 = vsyncpa [#allocation3], 1
    %s439 = scalar_lea.sflag [#allocation3], 1
    %440 = vsyncpa %s439, 1
    %441 = vsyncpa [#allocation4], 1
    %s442 = scalar_lea.sflag [#allocation4], 1
    %443 = vsyncpa %s442, 1

</llo_original>
